<compile_context>
chip_gen: v6e
topology: v6e:2x2x1
jax: 0.10.0
libtpu: 0.0.40
codegen_flags: <defaults>
</compile_context>

<pallas_src>
import jax
import jax.numpy as jnp
from jax.experimental import pallas as pl
from jax.experimental.pallas import tpu as pltpu


def _round_up(n: int, m: int) -> int:
    return ((n + m - 1) // m) * m


def _fc_kernel(x_ref, w1_ref, b1_ref, w2_ref, b2_ref, o_ref):
    # x_ref: (TM, Cp) bf16   w1_ref: (Cp, Hp) bf16   b1_ref: (1, Hp) f32
    # w2_ref: (Hp, Cp) bf16  b2_ref: (1, Cp) f32     o_ref: (TM, Cp) f32
    x = x_ref[...]
    # Linear 1: bf16 MXU inputs, f32 accumulation.
    h = jnp.dot(x, w1_ref[...], preferred_element_type=jnp.float32)
    h = h + b1_ref[...]               # f32 bias add (VPU, broadcast over rows)
    h = jax.nn.sigmoid(h)             # afnc() == nn.Sigmoid(); exp on EUP
    h = h.astype(jnp.bfloat16)        # keep 2nd matmul on the bf16 MXU path
    # Linear 2.
    y = jnp.dot(h, w2_ref[...], preferred_element_type=jnp.float32)
    y = y + b2_ref[...]
    # nn.Dropout(0.3) in eval mode: identity.
    o_ref[...] = y.astype(o_ref.dtype)


def _pick_tm(M: int, Cp: int, Hp: int, vmem_budget: int) -> int:
    """Largest row-tile (<=512, >=16, multiple of 16) that fits the VMEM budget."""
    # Resident weights + biases (double-buffered by the pipeline is the worst case).
    weights = 2 * (Cp * Hp * 2 + Hp * Cp * 2 + Hp * 4 + Cp * 4)
    tm = min(512, _round_up(M, 16))
    while tm > 16:
        # x tile (bf16, 2 bufs) + out tile (f32, 2 bufs) + in-kernel f32/bf16
        # hidden intermediates.
        per_tile = tm * Cp * 2 * 2 + tm * Cp * 4 * 2 + tm * Hp * (4 + 2) + tm * Cp * 4
        if weights + per_tile <= vmem_budget:
            break
        tm //= 2
    return max(16, _round_up(tm, 16))


@jax.jit
def fc_module(x, w1, b1, w2, b2):
    """x: (B, T, C) float32 -> (B, T, C) float32.

    w1: (C, 2C), b1: (1, 2C), w2: (2C, C), b2: (1, C)  (already transposed for
    the x @ W convention; PyTorch stores (out, in)).
    """
    B, T, C = x.shape
    H = 2 * C
    M = B * T

    # ---- lane-dense / tile-aligned padded problem sizes --------------------
    Cp = _round_up(C, 128)                 # lane-dense channels
    Hp = _round_up(H, 128)                 # lane-dense hidden dim
    vmem_limit = 48 * 1024 * 1024          # < v7x 64 MiB physical VMEM
    TM = _pick_tm(M, Cp, Hp, vmem_limit - (8 << 20))   # leave headroom
    Mp = _round_up(M, TM)                  # full tiles only

    # ---- cast + pad (zero padding is exact for this computation) -----------
    x2d = x.reshape(M, C).astype(jnp.bfloat16)
    xb = jnp.pad(x2d, ((0, Mp - M), (0, Cp - C)))
    w1b = jnp.pad(w1.astype(jnp.bfloat16), ((0, Cp - C), (0, Hp - H)))
    w2b = jnp.pad(w2.astype(jnp.bfloat16), ((0, Hp - H), (0, Cp - C)))
    b1p = jnp.pad(b1.astype(jnp.float32), ((0, 0), (0, Hp - H)))
    b2p = jnp.pad(b2.astype(jnp.float32), ((0, 0), (0, Cp - C)))

    grid = (Mp // TM,)

    cost = pl.CostEstimate(
        flops=4 * Mp * Cp * Hp,                       # two matmuls
        transcendentals=Mp * Hp,                      # sigmoid -> exp
        bytes_accessed=(Mp * Cp * 2                   # x (bf16 in)
                        + Cp * Hp * 2 + Hp * Cp * 2   # w1, w2 (bf16)
                        + Hp * 4 + Cp * 4             # biases (f32)
                        + Mp * Cp * 4),               # out (f32)
    )

    out_padded = pl.pallas_call(
        _fc_kernel,
        out_shape=jax.ShapeDtypeStruct((Mp, Cp), jnp.float32),
        grid=grid,
        in_specs=[
            pl.BlockSpec((TM, Cp), lambda i: (i, 0)),   # x tile (pipelined)
            pl.BlockSpec((Cp, Hp), lambda i: (0, 0)),   # w1 (VMEM-resident)
            pl.BlockSpec((1, Hp), lambda i: (0, 0)),    # b1 (resident)
            pl.BlockSpec((Hp, Cp), lambda i: (0, 0)),   # w2 (resident)
            pl.BlockSpec((1, Cp), lambda i: (0, 0)),    # b2 (resident)
        ],
        out_specs=pl.BlockSpec((TM, Cp), lambda i: (i, 0)),
        compiler_params=pltpu.CompilerParams(
            dimension_semantics=("parallel",),
            vmem_limit_bytes=vmem_limit,
        ),
        cost_estimate=cost,
    )(xb, w1b, b1p, w2b, b2p)

    return out_padded[:M, :C].reshape(B, T, C)


def init_params(key, n_embd):
    """Deterministic init mirroring nn.Linear's U(-1/sqrt(fan_in), 1/sqrt(fan_in))."""
    k1, k2, k3, k4 = jax.random.split(key, 4)
    hid = 2 * n_embd
    lim1 = 1.0 / jnp.sqrt(n_embd)
    lim2 = 1.0 / jnp.sqrt(hid)
    w1 = jax.random.uniform(k1, (n_embd, hid), jnp.float32, -lim1, lim1)
    b1 = jax.random.uniform(k2, (1, hid), jnp.float32, -lim1, lim1)
    w2 = jax.random.uniform(k3, (hid, n_embd), jnp.float32, -lim2, lim2)
    b2 = jax.random.uniform(k4, (1, n_embd), jnp.float32, -lim2, lim2)
    return w1, b1, w2, b2


if __name__ == "__main__":
    B, T, n_embd = 2, 8, 32
    key = jax.random.PRNGKey(0)
    kx, kp = jax.random.split(key)
    x = jax.random.normal(kx, (B, T, n_embd), jnp.float32)
    w1, b1, w2, b2 = init_params(kp, n_embd)

    out = fc_module(x, w1, b1, w2, b2)
    jax.block_until_ready(out)

    # Pure-JAX f32 reference (kernel uses bf16 MXU inputs with f32 accumulation,
    # so compare with a bf16-appropriate tolerance).
    ref = jax.nn.sigmoid(x.reshape(-1, n_embd) @ w1 + b1) @ w2 + b2
    ref = ref.reshape(B, T, n_embd)
    assert out.shape == (B, T, n_embd)
    assert jnp.allclose(out, ref, atol=2e-2, rtol=2e-2), "mismatch vs reference"
    print("KERNEL_OK")
</pallas_src>

<mosaic_0001>
module attributes {stable_mosaic.version = 11 : i64} {
  func.func @_fc_kernel(%arg0: i32, %arg1: memref<16x128xbf16, #tpu.memory_space<vmem>>, %arg2: memref<128x128xbf16, #tpu.memory_space<vmem>>, %arg3: memref<1x128xf32, #tpu.memory_space<vmem>>, %arg4: memref<128x128xbf16, #tpu.memory_space<vmem>>, %arg5: memref<1x128xf32, #tpu.memory_space<vmem>>, %arg6: memref<16x128xf32, #tpu.memory_space<vmem>>) attributes {dimension_semantics = [#tpu.dimension_semantics<parallel>], iteration_bounds = array<i64: 1>, scalar_prefetch = 0 : i64, scratch_operands = 0 : i64, tpu.core_type = #tpu.core_type<tc>, window_params = [{transform_indices = @transform_0, window_bounds = array<i64: 16, 128>}, {pipeline_mode = #tpu.pipeline_mode<synchronous>, transform_indices = @transform_1, window_bounds = array<i64: 128, 128>}, {pipeline_mode = #tpu.pipeline_mode<synchronous>, transform_indices = @transform_2, window_bounds = array<i64: 1, 128>}, {pipeline_mode = #tpu.pipeline_mode<synchronous>, transform_indices = @transform_3, window_bounds = array<i64: 128, 128>}, {pipeline_mode = #tpu.pipeline_mode<synchronous>, transform_indices = @transform_4, window_bounds = array<i64: 1, 128>}, {transform_indices = @transform_5, window_bounds = array<i64: 16, 128>}]} {
    %c0 = arith.constant 0 : index
    %c0_0 = arith.constant 0 : index
    %0 = vector.load %arg1[%c0, %c0_0] : memref<16x128xbf16, #tpu.memory_space<vmem>>, vector<16x128xbf16>
    %c0_1 = arith.constant 0 : index
    %c0_2 = arith.constant 0 : index
    %1 = vector.load %arg2[%c0_1, %c0_2] : memref<128x128xbf16, #tpu.memory_space<vmem>>, vector<128x128xbf16>
    %cst = arith.constant dense<0.000000e+00> : vector<16x128xf32>
    %2 = tpu.matmul %0, %1, %cst {dimension_numbers = #tpu.dot_dimension_numbers<[1], [0], [0], [1], [0, 0, 1, 1], [], []>} : vector<16x128xbf16>, vector<128x128xbf16>, vector<16x128xf32> -> vector<16x128xf32>
    %c0_3 = arith.constant 0 : index
    %c0_4 = arith.constant 0 : index
    %3 = vector.load %arg3[%c0_3, %c0_4] : memref<1x128xf32, #tpu.memory_space<vmem>>, vector<1x128xf32>
    %4 = vector.broadcast %3 : vector<1x128xf32> to vector<16x128xf32>
    %5 = arith.addf %2, %4 : vector<16x128xf32>
    %6 = arith.negf %5 : vector<16x128xf32>
    %7 = math.exp %6 : vector<16x128xf32>
    %cst_5 = arith.constant 1.000000e+00 : f32
    %8 = vector.broadcast %cst_5 : f32 to vector<16x128xf32>
    %9 = arith.addf %8, %7 : vector<16x128xf32>
    %10 = arith.divf %8, %9 : vector<16x128xf32>
    %11 = arith.truncf %10 : vector<16x128xf32> to vector<16x128xbf16>
    %c0_6 = arith.constant 0 : index
    %c0_7 = arith.constant 0 : index
    %12 = vector.load %arg4[%c0_6, %c0_7] : memref<128x128xbf16, #tpu.memory_space<vmem>>, vector<128x128xbf16>
    %cst_8 = arith.constant dense<0.000000e+00> : vector<16x128xf32>
    %13 = tpu.matmul %11, %12, %cst_8 {dimension_numbers = #tpu.dot_dimension_numbers<[1], [0], [0], [1], [0, 0, 1, 1], [], []>} : vector<16x128xbf16>, vector<128x128xbf16>, vector<16x128xf32> -> vector<16x128xf32>
    %c0_9 = arith.constant 0 : index
    %c0_10 = arith.constant 0 : index
    %14 = vector.load %arg5[%c0_9, %c0_10] : memref<1x128xf32, #tpu.memory_space<vmem>>, vector<1x128xf32>
    %15 = vector.broadcast %14 : vector<1x128xf32> to vector<16x128xf32>
    %16 = arith.addf %13, %15 : vector<16x128xf32>
    %c0_11 = arith.constant 0 : index
    %c0_12 = arith.constant 0 : index
    %17 = vector.load %arg6[%c0_11, %c0_12] : memref<16x128xf32, #tpu.memory_space<vmem>>, vector<16x128xf32>
    tpu.vector_store %arg6[%c0_11, %c0_12], %16 {strides = array<i32>} : memref<16x128xf32, #tpu.memory_space<vmem>>, vector<16x128xf32>,
    return
  }
  func.func @transform_0(%arg0: i32) -> (i32, i32) {
    %c0_i32 = arith.constant 0 : i32
    %c0_i32_0 = arith.constant 0 : i32
    return %arg0, %c0_i32 : i32, i32
  }
  func.func @transform_1(%arg0: i32) -> (i32, i32) {
    %c0_i32 = arith.constant 0 : i32
    %c0_i32_0 = arith.constant 0 : i32
    %c0_i32_1 = arith.constant 0 : i32
    return %c0_i32, %c0_i32_0 : i32, i32
  }
  func.func @transform_2(%arg0: i32) -> (i32, i32) {
    %c0_i32 = arith.constant 0 : i32
    %c0_i32_0 = arith.constant 0 : i32
    %c0_i32_1 = arith.constant 0 : i32
    return %c0_i32, %c0_i32_0 : i32, i32
  }
  func.func @transform_3(%arg0: i32) -> (i32, i32) {
    %c0_i32 = arith.constant 0 : i32
    %c0_i32_0 = arith.constant 0 : i32
    %c0_i32_1 = arith.constant 0 : i32
    return %c0_i32, %c0_i32_0 : i32, i32
  }
  func.func @transform_4(%arg0: i32) -> (i32, i32) {
    %c0_i32 = arith.constant 0 : i32
    %c0_i32_0 = arith.constant 0 : i32
    %c0_i32_1 = arith.constant 0 : i32
    return %c0_i32, %c0_i32_0 : i32, i32
  }
  func.func @transform_5(%arg0: i32) -> (i32, i32) {
    %c0_i32 = arith.constant 0 : i32
    %c0_i32_0 = arith.constant 0 : i32
    return %arg0, %c0_i32 : i32, i32
  }
}

</mosaic_0001>

<llo_original>
// kernel: fc_module.1
$region0: #{fc_module.1}
  #allocation0 [shape = 'u32[]', space=smem, size = 0x4, offset = 0x4, fixed_abs, tag = 'smem constant byte address 0x4 - core index']
  #allocation1 [shape = 'u32[144,128]{1,0:T(1,128)}', space=vmem, size = 0x12000, scoped, tag = 'internal scratch']
  %s0 = inlined_call_operand.vmem [shape: bf16[16,128], index: 0, kind: input, shape index: {}]
  %s1 = inlined_call_operand.vmem [shape: bf16[128,128], index: 1, kind: input, shape index: {}]
  %s2 = inlined_call_operand.vmem [shape: f32[1,128], index: 2, kind: input, shape index: {}]
  %s3 = inlined_call_operand.vmem [shape: bf16[128,128], index: 3, kind: input, shape index: {}]
  %s4 = inlined_call_operand.vmem [shape: f32[1,128], index: 4, kind: input, shape index: {}]
  %s5 = inlined_call_operand.vmem [shape: f32[16,128], index: 5, kind: output, shape index: {}]
  %s6 = sld [smem:[#allocation0]]
  $region30: #{fc_module.1} parent=0
    _
  %s8 = ssub.s32 1, %s6
  %s9 = scalar_select 0, %s8, %s6
  // Predicated region
  $region2: #{fc_module.1} parent=0 // pred_check
    _
  $region3: #{fc_module.1} parent=0 // pred_check_branch
    %11 = sbr.rel (0) target = $region5
  $region4: #{fc_module.1} parent=0 // pred_region
    _
  $region5: #{fc_module.1} parent=0 // pred_fallthru
    _
  // Predicated region
  $region6: #{fc_module.1} parent=0 // pred_check
    _
  $region7: #{fc_module.1} parent=0 // pred_check_branch
    %13 = sbr.rel (0) target = $region9
  $region8: #{fc_module.1} parent=0 // pred_region
    _
  $region9: #{fc_module.1} parent=0 // pred_fallthru
    _
  // Predicated region
  $region10: #{fc_module.1} parent=0 // pred_check
    _
  $region11: #{fc_module.1} parent=0 // pred_check_branch
    %15 = sbr.rel (0) target = $region13
  $region12: #{fc_module.1} parent=0 // pred_region
    _
  $region13: #{fc_module.1} parent=0 // pred_fallthru
    _
  // Predicated region
  $region14: #{fc_module.1} parent=0 // pred_check
    _
  $region15: #{fc_module.1} parent=0 // pred_check_branch
    %17 = sbr.rel (0) target = $region17
  $region16: #{fc_module.1} parent=0 // pred_region
    _
  $region17: #{fc_module.1} parent=0 // pred_fallthru
    _
  // Predicated region
  $region18: #{fc_module.1} parent=0 // pred_check
    _
  $region19: #{fc_module.1} parent=0 // pred_check_branch
    %19 = sbr.rel (0) target = $region21
  $region20: #{fc_module.1} parent=0 // pred_region
    _
  $region21: #{fc_module.1} parent=0 // pred_fallthru
    _
  %v21 = vld [vmem:[%s0] sm:$0xf]
  %v22 = vld [vmem:[%s0 + $0x4] sm:$0xf]
  %v23 = vld [vmem:[%s1] sm:$0xf]
  %v24 = vld [vmem:[%s1 + $0x4] sm:$0xf]
  %v25 = vld [vmem:[%s1 + $0x8] sm:$0xf]
  %v26 = vld [vmem:[%s1 + $0xc] sm:$0xf]
  %v27 = vld [vmem:[%s1 + $0x10] sm:$0xf]
  %v28 = vld [vmem:[%s1 + $0x14] sm:$0xf]
  %v29 = vld [vmem:[%s1 + $0x18] sm:$0xf]
  %v30 = vld [vmem:[%s1 + $0x1c] sm:$0xf]
  %v31 = vld [vmem:[%s1 + $0x20] sm:$0xf]
  %v32 = vld [vmem:[%s1 + $0x24] sm:$0xf]
  %v33 = vld [vmem:[%s1 + $0x28] sm:$0xf]
  %v34 = vld [vmem:[%s1 + $0x2c] sm:$0xf]
  %v35 = vld [vmem:[%s1 + $0x30] sm:$0xf]
  %v36 = vld [vmem:[%s1 + $0x34] sm:$0xf]
  %v37 = vld [vmem:[%s1 + $0x38] sm:$0xf]
  %v38 = vld [vmem:[%s1 + $0x3c] sm:$0xf]
  %v39 = vld [vmem:[%s2] sm:$0x1]
  %v41 = vlaneseq
  %v42 = vshrl.u32 %v41, 7
  %v43 = vsub.s32 0, %v42
  %v44 = vrot.slane %v39, %v43
  %v48 = vunpack.c.l.b16 %v21
  %v49 = vunpack.c.l.b16 %v22
  %v50 = vpack.c.b16 %v49, %v48
  %v68 = vunpack.c.l.b16 %v23
  %v69 = vunpack.c.l.b16 %v24
  %v70 = vunpack.c.l.b16 %v25
  %v71 = vunpack.c.l.b16 %v26
  %v72 = vunpack.c.l.b16 %v27
  %v73 = vunpack.c.l.b16 %v28
  %v74 = vunpack.c.l.b16 %v29
  %v75 = vunpack.c.l.b16 %v30
  %v76 = vunpack.c.l.b16 %v31
  %v77 = vunpack.c.l.b16 %v32
  %v78 = vunpack.c.l.b16 %v33
  %v79 = vunpack.c.l.b16 %v34
  %v80 = vunpack.c.l.b16 %v35
  %v81 = vunpack.c.l.b16 %v36
  %v82 = vunpack.c.l.b16 %v37
  %v83 = vunpack.c.l.b16 %v38
  %v84 = vpack.c.b16 %v69, %v68
  %v85 = vpack.c.b16 %v71, %v70
  %v86 = vpack.c.b16 %v73, %v72
  %v87 = vpack.c.b16 %v75, %v74
  %v88 = vpack.c.b16 %v77, %v76
  %v89 = vpack.c.b16 %v79, %v78
  %v90 = vpack.c.b16 %v81, %v80
  %v91 = vpack.c.b16 %v83, %v82
  %100 = vmatprep.subr.bf16.mxu0 0
  %101 = vmatpush1.bf16.msra.mxu0 %v91
  %102 = vmatprep.subr.bf16.mxu0 0
  %103 = vmatpush1.bf16.msra.mxu0 %v90
  %104 = vmatprep.subr.bf16.mxu0 0
  %105 = vmatpush1.bf16.msra.mxu0 %v89
  %106 = vmatprep.subr.bf16.mxu0 0
  %107 = vmatpush1.bf16.msra.mxu0 %v88
  %108 = vmatprep.subr.bf16.mxu0 0
  %109 = vmatpush1.bf16.msra.mxu0 %v87
  %110 = vmatprep.subr.bf16.mxu0 0
  %111 = vmatpush1.bf16.msra.mxu0 %v86
  %112 = vmatprep.subr.bf16.mxu0 0
  %113 = vmatpush1.bf16.msra.mxu0 %v85
  %114 = vmatprep.subr.bf16.mxu0 0
  %115 = vmatpush1.bf16.msra.mxu0 %v84
  %116 = vmatprep.subr.bf16.mxu0 0
  %117 = vmatpush2.bf16.msra.mxu0 0
  %118 = vmatprep.subr.bf16.mxu0 0
  %119 = vmatpush2.bf16.msra.mxu0 0
  %120 = vmatprep.subr.bf16.mxu0 0
  %121 = vmatpush2.bf16.msra.mxu0 0
  %122 = vmatprep.subr.bf16.mxu0 0
  %123 = vmatpush2.bf16.msra.mxu0 0
  %124 = vmatprep.subr.bf16.mxu0 0
  %125 = vmatpush2.bf16.msra.mxu0 0
  %126 = vmatprep.subr.bf16.mxu0 0
  %127 = vmatpush2.bf16.msra.mxu0 0
  %128 = vmatprep.subr.bf16.mxu0 0
  %129 = vmatpush2.bf16.msra.mxu0 0
  %130 = vmatprep.subr.bf16.mxu0 0
  %131 = vmatpush2.bf16.msra.mxu0 0
  %132 = vmatprep.mubr.bf16.mxu0 0
  %133 = vmatmul.mubr.bf16.gmra.mxu0 %v50
  %v134 = vpop.f32.mrf.mxu0
  %v135 = vadd.f32 %v44, %v134
  %v136 = vpop.f32.mrf.mxu0
  %v137 = vpop.f32.mrf.mxu0
  %v138 = vadd.f32 %v44, %v137
  %v139 = vpop.f32.mrf.mxu0
  %140 = vdwg.mxu0
  %v141 = vxor.u32 %v135, 2147483648
  %v142 = vxor.u32 %v138, 2147483648
  %v143 = vmul.f32 %v141, 1.442695
  %v144 = vpow.pop %v143
  %v145 = vmul.f32 %v142, 1.442695
  %v146 = vpow.pop %v145
  %v147 = vadd.f32 %v144, 1.0
  %v148 = vadd.f32 %v146, 1.0
  %v149 = vrcp.pop %v147
  %v150 = vmul.f32 1.0, %v149
  %v151 = vrcp.pop %v148
  %v152 = vmul.f32 1.0, %v151
  %v153 = vpack.c.bf16 %v152, %v150
  %v154 = vld [vmem:[%s3] sm:$0xf]
  %v155 = vld [vmem:[%s3 + $0x4] sm:$0xf]
  %v156 = vld [vmem:[%s3 + $0x8] sm:$0xf]
  %v157 = vld [vmem:[%s3 + $0xc] sm:$0xf]
  %v158 = vld [vmem:[%s3 + $0x10] sm:$0xf]
  %v159 = vld [vmem:[%s3 + $0x14] sm:$0xf]
  %v160 = vld [vmem:[%s3 + $0x18] sm:$0xf]
  %v161 = vld [vmem:[%s3 + $0x1c] sm:$0xf]
  %v162 = vld [vmem:[%s3 + $0x20] sm:$0xf]
  %v163 = vld [vmem:[%s3 + $0x24] sm:$0xf]
  %v164 = vld [vmem:[%s3 + $0x28] sm:$0xf]
  %v165 = vld [vmem:[%s3 + $0x2c] sm:$0xf]
  %v166 = vld [vmem:[%s3 + $0x30] sm:$0xf]
  %v167 = vld [vmem:[%s3 + $0x34] sm:$0xf]
  %v168 = vld [vmem:[%s3 + $0x38] sm:$0xf]
  %v169 = vld [vmem:[%s3 + $0x3c] sm:$0xf]
  %v170 = vld [vmem:[%s4] sm:$0x1]
  %v172 = vlaneseq
  %v173 = vshrl.u32 %v172, 7
  %v174 = vsub.s32 0, %v173
  %v175 = vrot.slane %v170, %v174
  %v193 = vunpack.c.l.b16 %v154
  %v194 = vunpack.c.l.b16 %v155
  %v195 = vunpack.c.l.b16 %v156
  %v196 = vunpack.c.l.b16 %v157
  %v197 = vunpack.c.l.b16 %v158
  %v198 = vunpack.c.l.b16 %v159
  %v199 = vunpack.c.l.b16 %v160
  %v200 = vunpack.c.l.b16 %v161
  %v201 = vunpack.c.l.b16 %v162
  %v202 = vunpack.c.l.b16 %v163
  %v203 = vunpack.c.l.b16 %v164
  %v204 = vunpack.c.l.b16 %v165
  %v205 = vunpack.c.l.b16 %v166
  %v206 = vunpack.c.l.b16 %v167
  %v207 = vunpack.c.l.b16 %v168
  %v208 = vunpack.c.l.b16 %v169
  %v209 = vpack.c.b16 %v194, %v193
  %v210 = vpack.c.b16 %v196, %v195
  %v211 = vpack.c.b16 %v198, %v197
  %v212 = vpack.c.b16 %v200, %v199
  %v213 = vpack.c.b16 %v202, %v201
  %v214 = vpack.c.b16 %v204, %v203
  %v215 = vpack.c.b16 %v206, %v205
  %v216 = vpack.c.b16 %v208, %v207
  %225 = vmatprep.subr.bf16.mxu0 0
  %226 = vmatpush1.bf16.msra.mxu0 %v216
  %227 = vmatprep.subr.bf16.mxu0 0
  %228 = vmatpush1.bf16.msra.mxu0 %v215
  %229 = vmatprep.subr.bf16.mxu0 0
  %230 = vmatpush1.bf16.msra.mxu0 %v214
  %231 = vmatprep.subr.bf16.mxu0 0
  %232 = vmatpush1.bf16.msra.mxu0 %v213
  %233 = vmatprep.subr.bf16.mxu0 0
  %234 = vmatpush1.bf16.msra.mxu0 %v212
  %235 = vmatprep.subr.bf16.mxu0 0
  %236 = vmatpush1.bf16.msra.mxu0 %v211
  %237 = vmatprep.subr.bf16.mxu0 0
  %238 = vmatpush1.bf16.msra.mxu0 %v210
  %239 = vmatprep.subr.bf16.mxu0 0
  %240 = vmatpush1.bf16.msra.mxu0 %v209
  %241 = vmatprep.subr.bf16.mxu0 0
  %242 = vmatpush2.bf16.msra.mxu0 0
  %243 = vmatprep.subr.bf16.mxu0 0
  %244 = vmatpush2.bf16.msra.mxu0 0
  %245 = vmatprep.subr.bf16.mxu0 0
  %246 = vmatpush2.bf16.msra.mxu0 0
  %247 = vmatprep.subr.bf16.mxu0 0
  %248 = vmatpush2.bf16.msra.mxu0 0
  %249 = vmatprep.subr.bf16.mxu0 0
  %250 = vmatpush2.bf16.msra.mxu0 0
  %251 = vmatprep.subr.bf16.mxu0 0
  %252 = vmatpush2.bf16.msra.mxu0 0
  %253 = vmatprep.subr.bf16.mxu0 0
  %254 = vmatpush2.bf16.msra.mxu0 0
  %255 = vmatprep.subr.bf16.mxu0 0
  %256 = vmatpush2.bf16.msra.mxu0 0
  %257 = vmatprep.mubr.bf16.mxu0 0
  %258 = vmatmul.mubr.bf16.gmra.mxu0 %v153
  %v259 = vpop.f32.mrf.mxu0
  %v260 = vadd.f32 %v175, %v259
  %v261 = vpop.f32.mrf.mxu0
  %v262 = vpop.f32.mrf.mxu0
  %v263 = vadd.f32 %v175, %v262
  %v264 = vpop.f32.mrf.mxu0
  %265 = vdwg.mxu0
  %266 = vst [vmem:[%s5] sm:$0xff] %v260
  %267 = vst [vmem:[%s5 + $0x8] sm:$0xff] %v263
  // Predicated region
  $region22: #{fc_module.1} parent=0 // pred_check
    _
  $region23: #{fc_module.1} parent=0 // pred_check_branch
    %269 = sbr.rel (0) target = $region25
  $region24: #{fc_module.1} parent=0 // pred_region
    _
  $region25: #{fc_module.1} parent=0 // pred_fallthru
    _
  // Predicated region
  $region26: #{fc_module.1} parent=0 // pred_check
    _
  $region27: #{fc_module.1} parent=0 // pred_check_branch
    %271 = sbr.rel (0) target = $region29
  $region28: #{fc_module.1} parent=0 // pred_region
    _
  $region29: #{fc_module.1} parent=0 // pred_fallthru
    _

</llo_original>
